<compile_context>
chip_gen: v7x
topology: tpu7x:2x2x1
jax: 0.10.0
libtpu: 0.0.40
codegen_flags: <defaults>
</compile_context>

<pallas_src>
import functools

import jax
import jax.numpy as jnp
from jax.experimental import pallas as pl
from jax.experimental.pallas import tpu as pltpu


# ------------------------------ helpers ------------------------------ #

def _round_up(x, m):
    return (x + m - 1) // m * m


# ------------------------------ Pallas kernel ------------------------------ #

def _patch_embed_kernel(x_ref, w_ref, b_ref, *rest, fuse_ln, eps):
    # refs: x (tm, K) bf16, w (K, N) bf16 (resident), bias (1, N) f32,
    #       [gamma (1, N), beta (1, N)], out (tm, N)
    if fuse_ln:
        g_ref, beta_ref, o_ref = rest
    else:
        (o_ref,) = rest

    # Single MXU pass per M tile, f32 accumulation.
    y = jnp.dot(x_ref[...], w_ref[...], preferred_element_type=jnp.float32)
    y = y + b_ref[...].astype(jnp.float32)          # bias in f32, applied once per tile

    if fuse_ln:
        # LayerNorm over embed_dim fused as the matmul epilogue (N block == full embed_dim).
        mu = jnp.mean(y, axis=-1, keepdims=True)
        var = jnp.mean(jnp.square(y - mu), axis=-1, keepdims=True)
        y = (y - mu) * jax.lax.rsqrt(var + eps)
        y = y * g_ref[...].astype(jnp.float32) + beta_ref[...].astype(jnp.float32)

    o_ref[...] = y.astype(o_ref.dtype)


def patch_linear(x2d, w2d, bias, gamma=None, beta=None, *,
                 fuse_ln=False, eps=1e-6, out_dtype=jnp.bfloat16, tm_target=512):
    """out = x2d @ w2d + bias, optionally followed by LayerNorm(embed_dim) * gamma + beta."""
    M, K = x2d.shape
    K2, N = w2d.shape
    assert K == K2
    out_bytes = jnp.dtype(out_dtype).itemsize

    # ---- M tile: as large as the problem / VMEM allows (multiple of 8 sublanes). ----
    tm = min(tm_target, _round_up(M, 8))
    tm = max(8, _round_up(tm, 8))

    def vmem_estimate(tm_):
        x_b = 2 * tm_ * K * 2                 # double-buffered bf16 activation tiles
        w_b = 2 * K * N * 2                   # resident bf16 weight (count conservatively)
        o_b = 2 * tm_ * N * out_bytes         # double-buffered output tiles
        acc_b = tm_ * N * 4                   # f32 matmul result before the narrowing cast
        misc = 8 * N * 4                      # bias / gamma / beta
        return x_b + w_b + o_b + acc_b + misc

    # Keep well under v7x's 64 MiB per-TensorCore VMEM (v5e/v6e have 2x slack).
    while tm > 8 and vmem_estimate(tm) > 40 * 1024 * 1024:
        tm = _round_up(tm // 2, 8)

    M_r = _round_up(M, tm)
    grid = (M_r // tm,)                       # 1-D grid: activations stream, weight stays put
    # NOTE: for production batch sizes M_r // tm >= 2, so v7x megacore gets both cores busy.

    # ---- operands: bf16 + pad-M fuse into the caller's im2col copy under jit. ----
    xp = x2d.astype(jnp.bfloat16)
    if M_r != M:
        xp = jnp.pad(xp, ((0, M_r - M), (0, 0)))
    wp = w2d.astype(jnp.bfloat16)
    bp = bias.astype(jnp.float32).reshape(1, N)

    in_specs = [
        pl.BlockSpec((tm, K), lambda i: (i, 0)),   # streamed activations
        pl.BlockSpec((K, N), lambda i: (0, 0)),    # constant block index -> fetched once
        pl.BlockSpec((1, N), lambda i: (0, 0)),
    ]
    args = [xp, wp, bp]
    if fuse_ln:
        in_specs += [
            pl.BlockSpec((1, N), lambda i: (0, 0)),
            pl.BlockSpec((1, N), lambda i: (0, 0)),
        ]
        args += [gamma.astype(jnp.float32).reshape(1, N),
                 beta.astype(jnp.float32).reshape(1, N)]

    cost = pl.CostEstimate(
        flops=2 * M_r * K * N,
        transcendentals=M_r if fuse_ln else 0,
        bytes_accessed=M_r * K * 2 + K * N * 2 + M_r * N * out_bytes,
    )

    vmem_limit = min(56 * 1024 * 1024,
                     max(32 * 1024 * 1024, int(vmem_estimate(tm) * 1.5)))

    out = pl.pallas_call(
        functools.partial(_patch_embed_kernel, fuse_ln=fuse_ln, eps=eps),
        out_shape=jax.ShapeDtypeStruct((M_r, N), out_dtype),
        grid_spec=pltpu.PrefetchScalarGridSpec(
            num_scalar_prefetch=0,
            grid=grid,
            in_specs=in_specs,
            out_specs=pl.BlockSpec((tm, N), lambda i: (i, 0)),
        ),
        compiler_params=pltpu.CompilerParams(
            dimension_semantics=("parallel",),
            vmem_limit_bytes=vmem_limit,
        ),
        cost_estimate=cost,
    )(*args)

    if M_r != M:
        out = out[:M]
    return out


# --------------------------- parameters & forward --------------------------- #

def init_params(key, patch_size, in_chans, embed_dim, use_norm=False):
    ph, pw = patch_size
    k1, k2, k3, k4 = jax.random.split(key, 4)
    params = dict(
        proj_w=jax.random.normal(k1, (embed_dim, in_chans, ph, pw), jnp.float32) * 0.02,
        proj_b=jax.random.normal(k2, (embed_dim,), jnp.float32) * 0.02,
    )
    if use_norm:  # norm_layer=nn.LayerNorm(embed_dim) case
        params["norm_w"] = 1.0 + 0.1 * jax.random.normal(k3, (embed_dim,), jnp.float32)
        params["norm_b"] = 0.1 * jax.random.normal(k4, (embed_dim,), jnp.float32)
    return params


def patch_embed_forward(params, x, patch_size, flatten=True, use_norm=False,
                        eps=1e-6, out_dtype=jnp.bfloat16):
    ph, pw = patch_size
    B, C, H, W = x.shape
    assert H % ph == 0 and W % pw == 0
    nh, nw = H // ph, W // pw
    E = params["proj_w"].shape[0]

    # im2col of non-overlapping patches (layout-only).  Under jit, this transpose/reshape,
    # the bf16 convert and any M padding fuse into a single XLA copy feeding the kernel.
    cols = x.reshape(B, C, nh, ph, nw, pw)
    cols = jnp.transpose(cols, (0, 2, 4, 1, 3, 5)).reshape(B * nh * nw, C * ph * pw)
    w2d = params["proj_w"].reshape(E, C * ph * pw).T  # matches Conv2d (c, ph, pw) flattening

    out = patch_linear(
        cols, w2d, params["proj_b"],
        params.get("norm_w"), params.get("norm_b"),
        fuse_ln=use_norm, eps=eps, out_dtype=out_dtype,
    )
    out = out.reshape(B, nh * nw, E)  # == proj(x).flatten(2).transpose(1, 2)

    if not flatten:
        # TODO(synk): flatten=False with a non-Identity norm_layer normalizes over W in PyTorch;
        # only the Identity-norm NCHW path is reproduced here.
        assert not use_norm
        out = jnp.transpose(out.reshape(B, nh, nw, E), (0, 3, 1, 2))
    return out


# ------------------------------ pure-JAX reference ------------------------------ #

def reference_forward(params, x, patch_size, use_norm=False, eps=1e-6):
    out = jax.lax.conv_general_dilated(
        x, params["proj_w"], window_strides=patch_size, padding="VALID",
        dimension_numbers=("NCHW", "OIHW", "NCHW"),
    )
    out = out + params["proj_b"][None, :, None, None]
    B, E, nh, nw = out.shape
    out = jnp.transpose(out.reshape(B, E, nh * nw), (0, 2, 1))
    if use_norm:
        mu = out.mean(-1, keepdims=True)
        var = jnp.square(out - mu).mean(-1, keepdims=True)
        out = (out - mu) / jnp.sqrt(var + eps) * params["norm_w"] + params["norm_b"]
    return out


# ------------------------------------ main ------------------------------------ #

if __name__ == "__main__":
    B, C, H, W = 2, 4, 16, 16
    patch_size = (8, 8)
    embed_dim = 256

    key = jax.random.PRNGKey(0)
    kx, kp = jax.random.split(key)
    x = jax.random.normal(kx, (B, C, H, W), jnp.float32)
    params = init_params(kp, patch_size, C, embed_dim, use_norm=True)

    nh, nw = H // patch_size[0], W // patch_size[1]

    fwd = jax.jit(
        patch_embed_forward,
        static_argnames=("patch_size", "flatten", "use_norm", "eps", "out_dtype"),
    )

    # Default module config: norm_layer=None -> Identity.
    out = jax.block_until_ready(
        fwd(params, x, patch_size=patch_size, use_norm=False, out_dtype=jnp.bfloat16))
    ref = reference_forward(params, x, patch_size, use_norm=False)
    assert out.shape == (B, nh * nw, embed_dim), out.shape
    err = float(jnp.max(jnp.abs(out.astype(jnp.float32) - ref)))
    assert err < 3e-2, f"identity-norm mismatch vs reference: {err}"

    # norm_layer=LayerNorm(embed_dim) config, with the LN fused into the matmul epilogue.
    out_ln = jax.block_until_ready(
        fwd(params, x, patch_size=patch_size, use_norm=True, out_dtype=jnp.bfloat16))
    ref_ln = reference_forward(params, x, patch_size, use_norm=True)
    err_ln = float(jnp.max(jnp.abs(out_ln.astype(jnp.float32) - ref_ln)))
    assert err_ln < 5e-2, f"fused-LN mismatch vs reference: {err_ln}"

    print("KERNEL_OK")
</pallas_src>

<mosaic_0001>
module attributes {stable_mosaic.version = 11 : i64} {
  func.func @_patch_embed_kernel(%arg0: i32, %arg1: memref<8x256xbf16, #tpu.memory_space<vmem>>, %arg2: memref<256x256xbf16, #tpu.memory_space<vmem>>, %arg3: memref<1x256xf32, #tpu.memory_space<vmem>>, %arg4: memref<8x256xbf16, #tpu.memory_space<vmem>>) attributes {dimension_semantics = [#tpu.dimension_semantics<parallel>], iteration_bounds = array<i64: 1>, scalar_prefetch = 0 : i64, scratch_operands = 0 : i64, tpu.core_type = #tpu.core_type<tc>, window_params = [{transform_indices = @transform_0, window_bounds = array<i64: 8, 256>}, {pipeline_mode = #tpu.pipeline_mode<synchronous>, transform_indices = @transform_1, window_bounds = array<i64: 256, 256>}, {pipeline_mode = #tpu.pipeline_mode<synchronous>, transform_indices = @transform_2, window_bounds = array<i64: 1, 256>}, {transform_indices = @transform_3, window_bounds = array<i64: 8, 256>}]} {
    %c0 = arith.constant 0 : index
    %c0_0 = arith.constant 0 : index
    %0 = vector.load %arg1[%c0, %c0_0] : memref<8x256xbf16, #tpu.memory_space<vmem>>, vector<8x256xbf16>
    %c0_1 = arith.constant 0 : index
    %c0_2 = arith.constant 0 : index
    %1 = vector.load %arg2[%c0_1, %c0_2] : memref<256x256xbf16, #tpu.memory_space<vmem>>, vector<256x256xbf16>
    %cst = arith.constant dense<0.000000e+00> : vector<8x256xf32>
    %2 = tpu.matmul %0, %1, %cst {dimension_numbers = #tpu.dot_dimension_numbers<[1], [0], [0], [1], [0, 0, 1, 1], [], []>} : vector<8x256xbf16>, vector<256x256xbf16>, vector<8x256xf32> -> vector<8x256xf32>
    %c0_3 = arith.constant 0 : index
    %c0_4 = arith.constant 0 : index
    %3 = vector.load %arg3[%c0_3, %c0_4] : memref<1x256xf32, #tpu.memory_space<vmem>>, vector<1x256xf32>
    %4 = vector.broadcast %3 : vector<1x256xf32> to vector<8x256xf32>
    %5 = arith.addf %2, %4 : vector<8x256xf32>
    %6 = arith.truncf %5 : vector<8x256xf32> to vector<8x256xbf16>
    %c0_5 = arith.constant 0 : index
    %c0_6 = arith.constant 0 : index
    %7 = vector.load %arg4[%c0_5, %c0_6] : memref<8x256xbf16, #tpu.memory_space<vmem>>, vector<8x256xbf16>
    tpu.vector_store %arg4[%c0_5, %c0_6], %6 {strides = array<i32>} : memref<8x256xbf16, #tpu.memory_space<vmem>>, vector<8x256xbf16>,
    return
  }
  func.func @transform_0(%arg0: i32) -> (i32, i32) {
    %c0_i32 = arith.constant 0 : i32
    %c0_i32_0 = arith.constant 0 : i32
    return %arg0, %c0_i32 : i32, i32
  }
  func.func @transform_1(%arg0: i32) -> (i32, i32) {
    %c0_i32 = arith.constant 0 : i32
    %c0_i32_0 = arith.constant 0 : i32
    %c0_i32_1 = arith.constant 0 : i32
    return %c0_i32, %c0_i32_0 : i32, i32
  }
  func.func @transform_2(%arg0: i32) -> (i32, i32) {
    %c0_i32 = arith.constant 0 : i32
    %c0_i32_0 = arith.constant 0 : i32
    %c0_i32_1 = arith.constant 0 : i32
    return %c0_i32, %c0_i32_0 : i32, i32
  }
  func.func @transform_3(%arg0: i32) -> (i32, i32) {
    %c0_i32 = arith.constant 0 : i32
    %c0_i32_0 = arith.constant 0 : i32
    return %arg0, %c0_i32 : i32, i32
  }
}

</mosaic_0001>

<llo_original>
// kernel: patch_embed_forward.1
$region0: #{patch_embed_forward.1}
  #allocation0 [shape = 'u32[]', space=smem, size = 0x4, offset = 0x4, fixed_abs, tag = 'smem constant byte address 0x4 - core index']
  #allocation1 [shape = 'u32[144,128]{1,0:T(1,128)}', space=vmem, size = 0x12000, scoped, tag = 'internal scratch']
  %s0 = inlined_call_operand.vmem [shape: bf16[8,256], index: 0, kind: input, shape index: {}]
  %s1 = inlined_call_operand.vmem [shape: bf16[256,256], index: 1, kind: input, shape index: {}]
  %s2 = inlined_call_operand.vmem [shape: f32[1,256], index: 2, kind: input, shape index: {}]
  %s3 = inlined_call_operand.vmem [shape: bf16[8,256], index: 3, kind: output, shape index: {}]
  %s4 = sld [smem:[#allocation0]]
  $region22: #{patch_embed_forward.1} parent=0
    _
  %s6 = ssub.s32 1, %s4
  %s7 = scalar_select 0, %s6, %s4
  // Predicated region
  $region2: #{patch_embed_forward.1} parent=0 // pred_check
    _
  $region3: #{patch_embed_forward.1} parent=0 // pred_check_branch
    %9 = sbr.rel (0) target = $region5
  $region4: #{patch_embed_forward.1} parent=0 // pred_region
    _
  $region5: #{patch_embed_forward.1} parent=0 // pred_fallthru
    _
  // Predicated region
  $region6: #{patch_embed_forward.1} parent=0 // pred_check
    _
  $region7: #{patch_embed_forward.1} parent=0 // pred_check_branch
    %11 = sbr.rel (0) target = $region9
  $region8: #{patch_embed_forward.1} parent=0 // pred_region
    _
  $region9: #{patch_embed_forward.1} parent=0 // pred_fallthru
    _
  // Predicated region
  $region10: #{patch_embed_forward.1} parent=0 // pred_check
    _
  $region11: #{patch_embed_forward.1} parent=0 // pred_check_branch
    %13 = sbr.rel (0) target = $region13
  $region12: #{patch_embed_forward.1} parent=0 // pred_region
    _
  $region13: #{patch_embed_forward.1} parent=0 // pred_fallthru
    _
  %v14 = vld [vmem:[%s0] sm:$0xff]
  %v15 = vld [vmem:[%s1] sm:$0xff]
  %v16 = vld [vmem:[%s1 + $0x8] sm:$0xff]
  %v17 = vld [vmem:[%s1 + $0x10] sm:$0xff]
  %v18 = vld [vmem:[%s1 + $0x18] sm:$0xff]
  %v19 = vld [vmem:[%s1 + $0x20] sm:$0xff]
  %v20 = vld [vmem:[%s1 + $0x28] sm:$0xff]
  %v21 = vld [vmem:[%s1 + $0x30] sm:$0xff]
  %v22 = vld [vmem:[%s1 + $0x38] sm:$0xff]
  %v23 = vld [vmem:[%s1 + $0x40] sm:$0xff]
  %v24 = vld [vmem:[%s1 + $0x48] sm:$0xff]
  %v25 = vld [vmem:[%s1 + $0x50] sm:$0xff]
  %v26 = vld [vmem:[%s1 + $0x58] sm:$0xff]
  %v27 = vld [vmem:[%s1 + $0x60] sm:$0xff]
  %v28 = vld [vmem:[%s1 + $0x68] sm:$0xff]
  %v29 = vld [vmem:[%s1 + $0x70] sm:$0xff]
  %v30 = vld [vmem:[%s1 + $0x78] sm:$0xff]
  %v31 = vld [vmem:[%s1 + $0x80] sm:$0xff]
  %v32 = vld [vmem:[%s1 + $0x88] sm:$0xff]
  %v33 = vld [vmem:[%s1 + $0x90] sm:$0xff]
  %v34 = vld [vmem:[%s1 + $0x98] sm:$0xff]
  %v35 = vld [vmem:[%s1 + $0xa0] sm:$0xff]
  %v36 = vld [vmem:[%s1 + $0xa8] sm:$0xff]
  %v37 = vld [vmem:[%s1 + $0xb0] sm:$0xff]
  %v38 = vld [vmem:[%s1 + $0xb8] sm:$0xff]
  %v39 = vld [vmem:[%s1 + $0xc0] sm:$0xff]
  %v40 = vld [vmem:[%s1 + $0xc8] sm:$0xff]
  %v41 = vld [vmem:[%s1 + $0xd0] sm:$0xff]
  %v42 = vld [vmem:[%s1 + $0xd8] sm:$0xff]
  %v43 = vld [vmem:[%s1 + $0xe0] sm:$0xff]
  %v44 = vld [vmem:[%s1 + $0xe8] sm:$0xff]
  %v45 = vld [vmem:[%s1 + $0xf0] sm:$0xff]
  %v46 = vld [vmem:[%s1 + $0xf8] sm:$0xff]
  %v47 = vld [vmem:[%s2] sm:$0x3]
  %v49 = vlaneseq
  %v50 = vshrl.u32 %v49, 7
  %v51 = vsub.s32 0, %v50
  %v52 = vrot.slane %v47, %v51
  %v53 = vlaneseq
  %v54 = vshrl.u32 %v53, 7
  %v55 = vsub.s32 1, %v54
  %v56 = vrot.slane %v47, %v55
  %v60 = vunpack.c.l.b16 %v14
  %v61 = vunpack.c.h.b16 %v14
  %v62 = vpack.c.b16 %v60, %v60
  %v63 = vpack.c.b16 %v61, %v61
  %v98 = vunpack.c.l.b16 %v15
  %v99 = vunpack.c.h.b16 %v15
  %v100 = vunpack.c.l.b16 %v16
  %v101 = vunpack.c.h.b16 %v16
  %v102 = vunpack.c.l.b16 %v17
  %v103 = vunpack.c.h.b16 %v17
  %v104 = vunpack.c.l.b16 %v18
  %v105 = vunpack.c.h.b16 %v18
  %v106 = vunpack.c.l.b16 %v19
  %v107 = vunpack.c.h.b16 %v19
  %v108 = vunpack.c.l.b16 %v20
  %v109 = vunpack.c.h.b16 %v20
  %v110 = vunpack.c.l.b16 %v21
  %v111 = vunpack.c.h.b16 %v21
  %v112 = vunpack.c.l.b16 %v22
  %v113 = vunpack.c.h.b16 %v22
  %v114 = vunpack.c.l.b16 %v23
  %v115 = vunpack.c.h.b16 %v23
  %v116 = vunpack.c.l.b16 %v24
  %v117 = vunpack.c.h.b16 %v24
  %v118 = vunpack.c.l.b16 %v25
  %v119 = vunpack.c.h.b16 %v25
  %v120 = vunpack.c.l.b16 %v26
  %v121 = vunpack.c.h.b16 %v26
  %v122 = vunpack.c.l.b16 %v27
  %v123 = vunpack.c.h.b16 %v27
  %v124 = vunpack.c.l.b16 %v28
  %v125 = vunpack.c.h.b16 %v28
  %v126 = vunpack.c.l.b16 %v29
  %v127 = vunpack.c.h.b16 %v29
  %v128 = vunpack.c.l.b16 %v30
  %v129 = vunpack.c.h.b16 %v30
  %v130 = vunpack.c.l.b16 %v31
  %v131 = vunpack.c.h.b16 %v31
  %v132 = vunpack.c.l.b16 %v32
  %v133 = vunpack.c.h.b16 %v32
  %v134 = vunpack.c.l.b16 %v33
  %v135 = vunpack.c.h.b16 %v33
  %v136 = vunpack.c.l.b16 %v34
  %v137 = vunpack.c.h.b16 %v34
  %v138 = vunpack.c.l.b16 %v35
  %v139 = vunpack.c.h.b16 %v35
  %v140 = vunpack.c.l.b16 %v36
  %v141 = vunpack.c.h.b16 %v36
  %v142 = vunpack.c.l.b16 %v37
  %v143 = vunpack.c.h.b16 %v37
  %v144 = vunpack.c.l.b16 %v38
  %v145 = vunpack.c.h.b16 %v38
  %v146 = vunpack.c.l.b16 %v39
  %v147 = vunpack.c.h.b16 %v39
  %v148 = vunpack.c.l.b16 %v40
  %v149 = vunpack.c.h.b16 %v40
  %v150 = vunpack.c.l.b16 %v41
  %v151 = vunpack.c.h.b16 %v41
  %v152 = vunpack.c.l.b16 %v42
  %v153 = vunpack.c.h.b16 %v42
  %v154 = vunpack.c.l.b16 %v43
  %v155 = vunpack.c.h.b16 %v43
  %v156 = vunpack.c.l.b16 %v44
  %v157 = vunpack.c.h.b16 %v44
  %v158 = vunpack.c.l.b16 %v45
  %v159 = vunpack.c.h.b16 %v45
  %v160 = vunpack.c.l.b16 %v46
  %v161 = vunpack.c.h.b16 %v46
  %v162 = vpack.c.b16 %v100, %v98
  %v163 = vpack.c.b16 %v101, %v99
  %v164 = vpack.c.b16 %v104, %v102
  %v165 = vpack.c.b16 %v105, %v103
  %v166 = vpack.c.b16 %v108, %v106
  %v167 = vpack.c.b16 %v109, %v107
  %v168 = vpack.c.b16 %v112, %v110
  %v169 = vpack.c.b16 %v113, %v111
  %v170 = vpack.c.b16 %v116, %v114
  %v171 = vpack.c.b16 %v117, %v115
  %v172 = vpack.c.b16 %v120, %v118
  %v173 = vpack.c.b16 %v121, %v119
  %v174 = vpack.c.b16 %v124, %v122
  %v175 = vpack.c.b16 %v125, %v123
  %v176 = vpack.c.b16 %v128, %v126
  %v177 = vpack.c.b16 %v129, %v127
  %v178 = vpack.c.b16 %v132, %v130
  %v179 = vpack.c.b16 %v133, %v131
  %v180 = vpack.c.b16 %v136, %v134
  %v181 = vpack.c.b16 %v137, %v135
  %v182 = vpack.c.b16 %v140, %v138
  %v183 = vpack.c.b16 %v141, %v139
  %v184 = vpack.c.b16 %v144, %v142
  %v185 = vpack.c.b16 %v145, %v143
  %v186 = vpack.c.b16 %v148, %v146
  %v187 = vpack.c.b16 %v149, %v147
  %v188 = vpack.c.b16 %v152, %v150
  %v189 = vpack.c.b16 %v153, %v151
  %v190 = vpack.c.b16 %v156, %v154
  %v191 = vpack.c.b16 %v157, %v155
  %v192 = vpack.c.b16 %v160, %v158
  %v193 = vpack.c.b16 %v161, %v159
  %226 = vmatprep.subr.bf16.mxu0 %v163
  %227 = vmatpush1.bf16.msra.mxu0 %v162
  %228 = vmatprep.subr.bf16.mxu0 %v165
  %229 = vmatpush1.bf16.msra.mxu0 %v164
  %230 = vmatprep.subr.bf16.mxu0 %v167
  %231 = vmatpush1.bf16.msra.mxu0 %v166
  %232 = vmatprep.subr.bf16.mxu0 %v169
  %233 = vmatpush1.bf16.msra.mxu0 %v168
  %234 = vmatprep.subr.bf16.mxu0 %v171
  %235 = vmatpush1.bf16.msra.mxu0 %v170
  %236 = vmatprep.subr.bf16.mxu0 %v173
  %237 = vmatpush1.bf16.msra.mxu0 %v172
  %238 = vmatprep.subr.bf16.mxu0 %v175
  %239 = vmatpush1.bf16.msra.mxu0 %v174
  %240 = vmatprep.subr.bf16.mxu0 %v177
  %241 = vmatpush1.bf16.msra.mxu0 %v176
  %242 = vmatprep.subr.bf16.mxu0 %v179
  %243 = vmatpush1.bf16.msra.mxu0 %v178
  %244 = vmatprep.subr.bf16.mxu0 %v181
  %245 = vmatpush1.bf16.msra.mxu0 %v180
  %246 = vmatprep.subr.bf16.mxu0 %v183
  %247 = vmatpush1.bf16.msra.mxu0 %v182
  %248 = vmatprep.subr.bf16.mxu0 %v185
  %249 = vmatpush1.bf16.msra.mxu0 %v184
  %250 = vmatprep.subr.bf16.mxu0 %v187
  %251 = vmatpush1.bf16.msra.mxu0 %v186
  %252 = vmatprep.subr.bf16.mxu0 %v189
  %253 = vmatpush1.bf16.msra.mxu0 %v188
  %254 = vmatprep.subr.bf16.mxu0 %v191
  %255 = vmatpush1.bf16.msra.mxu0 %v190
  %256 = vmatprep.subr.bf16.mxu0 %v193
  %257 = vmatpush1.bf16.msra.mxu0 %v192
  %258 = vmatprep.mubr.bf16.mxu0 %v63
  %259 = vmatmul.mubr.bf16.gmra.mrb[0].mxu0 %v62
  %v260 = vpop.f32.mrb[0].mxu0
  %v261 = vadd.f32 %v52, %v260
  %v262 = vpop.f32.mrb[0].mxu0
  %v263 = vadd.f32 %v56, %v262
  %v264 = vpop.f32.mrb[0].mxu0
  %v265 = vpop.f32.mrb[0].mxu0
  %266 = vdwg.mxu0
  %v267 = vpack.c.bf16 %v261, %v261
  %v268 = vpack.c.bf16 %v263, %v263
  %v271 = vunpack.c.l.b16 %v267
  %v272 = vunpack.c.l.b16 %v268
  %v273 = vpack.c.b16 %v272, %v271
  %275 = vst [vmem:[%s3] sm:$0xff] %v273
  // Predicated region
  $region14: #{patch_embed_forward.1} parent=0 // pred_check
    _
  $region15: #{patch_embed_forward.1} parent=0 // pred_check_branch
    %277 = sbr.rel (0) target = $region17
  $region16: #{patch_embed_forward.1} parent=0 // pred_region
    _
  $region17: #{patch_embed_forward.1} parent=0 // pred_fallthru
    _
  // Predicated region
  $region18: #{patch_embed_forward.1} parent=0 // pred_check
    _
  $region19: #{patch_embed_forward.1} parent=0 // pred_check_branch
    %279 = sbr.rel (0) target = $region21
  $region20: #{patch_embed_forward.1} parent=0 // pred_region
    _
  $region21: #{patch_embed_forward.1} parent=0 // pred_fallthru
    _

</llo_original>
